<compile_context>
chip_gen: v6e
topology: v6e:2x2x1
jax: 0.10.0
libtpu: 0.0.40
codegen_flags: <defaults>
</compile_context>

<pallas_src>
import functools

import jax
import jax.numpy as jnp
from jax.experimental import pallas as pl
from jax.experimental.pallas import tpu as pltpu


def _triplet_kernel(a_ref, p_ref, n_ref, o_ref, acc_ref, *,
                    margin, n_total, inner_steps):
    """One batch tile: accumulate the sum of per-sample triplet losses."""
    c = pl.program_id(0)          # slice (parallel across TensorCores on v7x)
    i = pl.program_id(1)          # batch tile within the slice (arbitrary)
    tile_rows = a_ref.shape[0]

    @pl.when(i == 0)
    def _init():
        acc_ref[...] = jnp.zeros_like(acc_ref)

    # Deferred upcast: hold at most ~3 (tile_rows, D) f32 temporaries live.
    a32 = a_ref[...].astype(jnp.float32)

    if margin is None:
        # SoftMarginLoss( ||a-n|| - ||a-p|| , y=1 ) = mean softplus(-(an - ap))
        d = a32 - p_ref[...].astype(jnp.float32)
        ap = jnp.sqrt(jnp.sum(d * d, axis=1, keepdims=True))          # (TN, 1)
        d = a32 - n_ref[...].astype(jnp.float32)
        an = jnp.sqrt(jnp.sum(d * d, axis=1, keepdims=True))          # (TN, 1)
        x = an - ap
        # Stable: log(1 + exp(-x)) = max(-x, 0) + log1p(exp(-|x|))
        loss_row = jnp.maximum(-x, 0.0) + jnp.log1p(jnp.exp(-jnp.abs(x)))
    else:
        # TripletMarginLoss(margin, p=2); F.pairwise_distance adds eps to diff.
        eps = 1e-6
        d = (a32 - p_ref[...].astype(jnp.float32)) + eps
        ap = jnp.sqrt(jnp.sum(d * d, axis=1, keepdims=True))          # (TN, 1)
        d = (a32 - n_ref[...].astype(jnp.float32)) + eps
        an = jnp.sqrt(jnp.sum(d * d, axis=1, keepdims=True))          # (TN, 1)
        loss_row = jnp.maximum(ap - an + margin, 0.0)

    # Mask rows past the true batch size (partial trailing tile, or a tile that
    # was duplicated because an odd tile count was split across slices).
    row_start = (c * inner_steps + i) * tile_rows
    row = jax.lax.broadcasted_iota(jnp.int32, (tile_rows, 1), 0) + row_start
    loss_row = jnp.where(row < n_total, loss_row, 0.0)

    acc_ref[...] += jnp.sum(loss_row, axis=(0, 1), keepdims=True)     # (1, 1)

    @pl.when(i == inner_steps - 1)
    def _finalize():
        # Lane-dense (8, 128) tile holding this slice's partial sum (broadcast).
        o_ref[...] = jnp.broadcast_to(acc_ref[...], o_ref.shape)


def _choose_tile_rows(n_rows, d, itemsize):
    """Largest row tile keeping all VMEM residents inside a portable budget.

    Budget covers: 3 inputs x 2 pipeline buffers (native dtype), ~3 (tn, D)
    f32 row temporaries from the in-kernel upcast, and ~5 (tn, 1) f32 column
    intermediates (a lane-1 column costs ~512 B/row of VMEM).
    """
    budget_bytes = 36 * 1024 * 1024          # safe on v7x (64 MiB physical)
    per_row_bytes = (3 * 2 * d * itemsize    # pipelined input double-buffers
                     + 3 * d * 4             # f32 upcast / diff temporaries
                     + 5 * 512)              # (tn, 1) f32 columns
    tn = budget_bytes // per_row_bytes
    tn = min(int(tn), 32768)                 # paranoia cap for tiny D
    mult = {4: 8, 2: 16, 1: 32}.get(int(itemsize), 8)   # dtype-native sublane
    tn = max(mult, (tn // mult) * mult)
    if n_rows <= tn:
        return n_rows                        # single full-extent block (legal)
    return tn


def triplet_loss(anchor, pos, neg, margin=None, *, block_rows=None,
                 num_slices=None):
    """Pallas implementation of TripletLoss.forward. Returns a scalar f32.

    The kernel is HBM-bandwidth bound; feeding bf16 (or narrower) embeddings
    halves the traffic on every TPU generation — accumulation is f32 inside.
    """
    N, D = anchor.shape
    assert pos.shape == (N, D) and neg.shape == (N, D)

    itemsize = jnp.dtype(anchor.dtype).itemsize
    tn = block_rows if block_rows is not None else _choose_tile_rows(N, D, itemsize)
    tn = min(int(tn), N)

    n_tiles = pl.cdiv(N, tn)
    if num_slices is None:
        # Auto: 2-way slice (uses both TensorCores on v7x) only when the tile
        # count splits evenly, so 1-TC chips never pay for a duplicated tile.
        n_slices = 2 if (n_tiles >= 2 and n_tiles % 2 == 0) else 1
    else:
        n_slices = max(1, min(int(num_slices), n_tiles))
    inner = pl.cdiv(n_tiles, n_slices)
    last_tile = n_tiles - 1

    def in_idx(c, i):
        # Clamp: with an odd tile count forced into 2 slices, the extra step
        # re-reads the last real tile; its rows are masked out in the kernel.
        return (jnp.minimum(c * inner + i, last_tile), 0)

    in_spec = pl.BlockSpec((tn, D), in_idx)
    out_spec = pl.BlockSpec((8, 128), lambda c, i: (c, 0))

    kernel = functools.partial(
        _triplet_kernel,
        margin=None if margin is None else float(margin),
        n_total=N,
        inner_steps=inner,
    )

    out = pl.pallas_call(
        kernel,
        out_shape=jax.ShapeDtypeStruct((n_slices * 8, 128), jnp.float32),
        grid=(n_slices, inner),
        in_specs=[in_spec, in_spec, in_spec],
        out_specs=out_spec,
        scratch_shapes=[pltpu.VMEM((1, 1), jnp.float32)],
        compiler_params=pltpu.CompilerParams(
            dimension_semantics=("parallel", "arbitrary"),
            vmem_limit_bytes=48 * 1024 * 1024,
        ),
    )(anchor, pos, neg)

    partials = out.reshape(n_slices, 8, 128)[:, 0, 0]
    return jnp.sum(partials) * (1.0 / N)


def _reference_loss(anchor, pos, neg, margin=None):
    """Pure-JAX reference mirroring the PyTorch semantics."""
    a = anchor.astype(jnp.float32)
    p = pos.astype(jnp.float32)
    n = neg.astype(jnp.float32)
    if margin is None:
        ap = jnp.sqrt(jnp.sum((a - p) ** 2, axis=1))
        an = jnp.sqrt(jnp.sum((a - n) ** 2, axis=1))
        x = an - ap
        return jnp.mean(jnp.maximum(-x, 0.0) + jnp.log1p(jnp.exp(-jnp.abs(x))))
    eps = 1e-6
    ap = jnp.sqrt(jnp.sum((a - p + eps) ** 2, axis=1))
    an = jnp.sqrt(jnp.sum((a - n + eps) ** 2, axis=1))
    return jnp.mean(jnp.maximum(ap - an + margin, 0.0))


if __name__ == "__main__":
    key = jax.random.PRNGKey(0)

    # --- Case 1: small batch, single-block path (batch=8, hidden=32) ---------
    ka, kp, kn = jax.random.split(key, 3)
    N, D = 8, 32
    anchor = jax.random.normal(ka, (N, D), dtype=jnp.float32)
    pos = jax.random.normal(kp, (N, D), dtype=jnp.float32)
    neg = jax.random.normal(kn, (N, D), dtype=jnp.float32)

    loss_soft = jax.block_until_ready(triplet_loss(anchor, pos, neg, margin=None))
    ref_soft = _reference_loss(anchor, pos, neg, margin=None)
    assert jnp.allclose(loss_soft, ref_soft, rtol=1e-5, atol=1e-6), (loss_soft, ref_soft)

    loss_margin = jax.block_until_ready(triplet_loss(anchor, pos, neg, margin=0.3))
    ref_margin = _reference_loss(anchor, pos, neg, margin=0.3)
    assert jnp.allclose(loss_margin, ref_margin, rtol=1e-5, atol=1e-6), (loss_margin, ref_margin)

    # --- Case 2: multi-tile grid + partial-tile masking (N=20, 8-row tiles) --
    k2 = jax.random.PRNGKey(1)
    ka2, kp2, kn2 = jax.random.split(k2, 3)
    N2, D2 = 20, 32
    a2 = jax.random.normal(ka2, (N2, D2), dtype=jnp.float32)
    p2 = jax.random.normal(kp2, (N2, D2), dtype=jnp.float32)
    n2 = jax.random.normal(kn2, (N2, D2), dtype=jnp.float32)

    l2_soft = jax.block_until_ready(
        triplet_loss(a2, p2, n2, margin=None, block_rows=8))
    r2_soft = _reference_loss(a2, p2, n2, margin=None)
    assert jnp.allclose(l2_soft, r2_soft, rtol=1e-5, atol=1e-6), (l2_soft, r2_soft)

    l2_margin = jax.block_until_ready(
        triplet_loss(a2, p2, n2, margin=0.3, block_rows=8))
    r2_margin = _reference_loss(a2, p2, n2, margin=0.3)
    assert jnp.allclose(l2_margin, r2_margin, rtol=1e-5, atol=1e-6), (l2_margin, r2_margin)

    # --- Case 3: forced 2-way slice split with an odd tile count (clamp path)
    l2_split = jax.block_until_ready(
        triplet_loss(a2, p2, n2, margin=0.3, block_rows=8, num_slices=2))
    assert jnp.allclose(l2_split, r2_margin, rtol=1e-5, atol=1e-6), (l2_split, r2_margin)

    l2s_soft = jax.block_until_ready(
        triplet_loss(a2, p2, n2, margin=None, block_rows=8, num_slices=2))
    assert jnp.allclose(l2s_soft, r2_soft, rtol=1e-5, atol=1e-6), (l2s_soft, r2_soft)

    # --- Case 4: bf16 inputs (half HBM traffic), 16-row tiles, 2-way split ---
    a3 = a2.astype(jnp.bfloat16)
    p3 = p2.astype(jnp.bfloat16)
    n3 = n2.astype(jnp.bfloat16)
    l3 = jax.block_until_ready(
        triplet_loss(a3, p3, n3, margin=0.3, block_rows=16))
    r3 = _reference_loss(a3, p3, n3, margin=0.3)
    assert jnp.allclose(l3, r3, rtol=2e-2, atol=2e-2), (l3, r3)

    l3_soft = jax.block_until_ready(triplet_loss(a3, p3, n3, margin=None))
    r3_soft = _reference_loss(a3, p3, n3, margin=None)
    assert jnp.allclose(l3_soft, r3_soft, rtol=2e-2, atol=2e-2), (l3_soft, r3_soft)

    print("KERNEL_OK")
</pallas_src>

<mosaic_0001>
module attributes {stable_mosaic.version = 11 : i64} {
  func.func @_triplet_kernel(%arg0: i32, %arg1: i32, %arg2: memref<8x32xf32, #tpu.memory_space<vmem>>, %arg3: memref<8x32xf32, #tpu.memory_space<vmem>>, %arg4: memref<8x32xf32, #tpu.memory_space<vmem>>, %arg5: memref<8x128xf32, #tpu.memory_space<vmem>>, %arg6: memref<1x1xf32, #tpu.memory_space<vmem>>) attributes {dimension_semantics = [#tpu.dimension_semantics<parallel>, #tpu.dimension_semantics<arbitrary>], iteration_bounds = array<i64: 1, 1>, scalar_prefetch = 0 : i64, scratch_operands = 1 : i64, tpu.core_type = #tpu.core_type<tc>, window_params = [{transform_indices = @transform_0, window_bounds = array<i64: 8, 32>}, {transform_indices = @transform_1, window_bounds = array<i64: 8, 32>}, {transform_indices = @transform_2, window_bounds = array<i64: 8, 32>}, {transform_indices = @transform_3, window_bounds = array<i64: 8, 128>}]} {
    %c0_i32 = arith.constant 0 : i32
    %0 = arith.cmpi eq, %arg1, %c0_i32 : i32
    %1 = arith.extui %0 : i1 to i32
    %c0_i32_0 = arith.constant 0 : i32
    %2 = arith.cmpi ne, %1, %c0_i32_0 : i32
    scf.if %2 {
      %cst_19 = arith.constant 0.000000e+00 : f32
      %48 = vector.broadcast %cst_19 : f32 to vector<1x1xf32>
      %c0_20 = arith.constant 0 : index
      %c0_21 = arith.constant 0 : index
      %49 = vector.load %arg6[%c0_20, %c0_21] : memref<1x1xf32, #tpu.memory_space<vmem>>, vector<1x1xf32>
      tpu.vector_store %arg6[%c0_20, %c0_21], %48 {strides = array<i32>} : memref<1x1xf32, #tpu.memory_space<vmem>>, vector<1x1xf32>,
    } else {
    }
    %c0 = arith.constant 0 : index
    %c0_1 = arith.constant 0 : index
    %3 = vector.load %arg2[%c0, %c0_1] : memref<8x32xf32, #tpu.memory_space<vmem>>, vector<8x32xf32>
    %c0_2 = arith.constant 0 : index
    %c0_3 = arith.constant 0 : index
    %4 = vector.load %arg3[%c0_2, %c0_3] : memref<8x32xf32, #tpu.memory_space<vmem>>, vector<8x32xf32>
    %5 = arith.subf %3, %4 : vector<8x32xf32>
    %6 = arith.mulf %5, %5 : vector<8x32xf32>
    %cst = arith.constant dense<0.000000e+00> : vector<8xf32>
    %7 = vector.multi_reduction <add>, %6, %cst [1] : vector<8x32xf32> to vector<8xf32>
    %8 = vector.shape_cast %7 : vector<8xf32> to vector<8x1xf32>
    %9 = math.sqrt %8 : vector<8x1xf32>
    %c0_4 = arith.constant 0 : index
    %c0_5 = arith.constant 0 : index
    %10 = vector.load %arg4[%c0_4, %c0_5] : memref<8x32xf32, #tpu.memory_space<vmem>>, vector<8x32xf32>
    %11 = arith.subf %3, %10 : vector<8x32xf32>
    %12 = arith.mulf %11, %11 : vector<8x32xf32>
    %cst_6 = arith.constant dense<0.000000e+00> : vector<8xf32>
    %13 = vector.multi_reduction <add>, %12, %cst_6 [1] : vector<8x32xf32> to vector<8xf32>
    %14 = vector.shape_cast %13 : vector<8xf32> to vector<8x1xf32>
    %15 = math.sqrt %14 : vector<8x1xf32>
    %16 = arith.subf %15, %9 : vector<8x1xf32>
    %cst_7 = arith.constant 0.000000e+00 : f32
    %17 = vector.broadcast %cst_7 : f32 to vector<8x1xf32>
    %18 = arith.subf %17, %16 : vector<8x1xf32>
    %cst_8 = arith.constant 0.000000e+00 : f32
    %19 = vector.broadcast %cst_8 : f32 to vector<8x1xf32>
    %20 = arith.maximumf %18, %19 : vector<8x1xf32>
    %21 = math.absf %16 : vector<8x1xf32>
    %cst_9 = arith.constant 0.000000e+00 : f32
    %22 = vector.broadcast %cst_9 : f32 to vector<8x1xf32>
    %23 = arith.subf %22, %21 : vector<8x1xf32>
    %24 = math.exp %23 : vector<8x1xf32>
    %25 = math.log1p %24 : vector<8x1xf32>
    %26 = arith.addf %20, %25 : vector<8x1xf32>
    %c1_i32 = arith.constant 1 : i32
    %27 = arith.muli %arg0, %c1_i32 : i32
    %28 = arith.addi %27, %arg1 : i32
    %c8_i32 = arith.constant 8 : i32
    %29 = arith.muli %28, %c8_i32 : i32
    %30 = tpu.iota {dimensions = array<i32: 0>} : vector<8x1xi32>
    %31 = vector.broadcast %29 : i32 to vector<8x1xi32>
    %32 = arith.addi %30, %31 : vector<8x1xi32>
    %c8_i32_10 = arith.constant 8 : i32
    %33 = vector.broadcast %c8_i32_10 : i32 to vector<8x1xi32>
    %34 = arith.cmpi slt, %32, %33 : vector<8x1xi32>
    %cst_11 = arith.constant 0.000000e+00 : f32
    %35 = vector.broadcast %cst_11 : f32 to vector<8x1xf32>
    %36 = arith.select %34, %26, %35 : vector<8x1xi1>, vector<8x1xf32>
    %c0_12 = arith.constant 0 : index
    %c0_13 = arith.constant 0 : index
    %37 = vector.load %arg6[%c0_12, %c0_13] : memref<1x1xf32, #tpu.memory_space<vmem>>, vector<1x1xf32>
    %38 = vector.shape_cast %36 : vector<8x1xf32> to vector<1x8x1xf32>
    %cst_14 = arith.constant dense<0.000000e+00> : vector<1xf32>
    %39 = vector.multi_reduction <add>, %38, %cst_14 [1, 2] : vector<1x8x1xf32> to vector<1xf32>
    %40 = vector.shape_cast %39 : vector<1xf32> to vector<1x1x1xf32>
    %41 = vector.extract %40[0, 0, 0] : f32 from vector<1x1x1xf32>
    %42 = vector.broadcast %41 : f32 to vector<1x1xf32>
    %43 = arith.addf %37, %42 : vector<1x1xf32>
    %c0_15 = arith.constant 0 : index
    %c0_16 = arith.constant 0 : index
    %44 = vector.load %arg6[%c0_15, %c0_16] : memref<1x1xf32, #tpu.memory_space<vmem>>, vector<1x1xf32>
    tpu.vector_store %arg6[%c0_15, %c0_16], %43 {strides = array<i32>} : memref<1x1xf32, #tpu.memory_space<vmem>>, vector<1x1xf32>,
    %c0_i32_17 = arith.constant 0 : i32
    %45 = arith.cmpi eq, %arg1, %c0_i32_17 : i32
    %46 = arith.extui %45 : i1 to i32
    %c0_i32_18 = arith.constant 0 : i32
    %47 = arith.cmpi ne, %46, %c0_i32_18 : i32
    scf.if %47 {
      %c0_19 = arith.constant 0 : index
      %c0_20 = arith.constant 0 : index
      %48 = vector.load %arg6[%c0_19, %c0_20] : memref<1x1xf32, #tpu.memory_space<vmem>>, vector<1x1xf32>
      %49 = vector.shape_cast %48 : vector<1x1xf32> to vector<1x1xf32>
      %50 = vector.broadcast %49 : vector<1x1xf32> to vector<8x128xf32>
      %c0_21 = arith.constant 0 : index
      %c0_22 = arith.constant 0 : index
      %51 = vector.load %arg5[%c0_21, %c0_22] : memref<8x128xf32, #tpu.memory_space<vmem>>, vector<8x128xf32>
      tpu.vector_store %arg5[%c0_21, %c0_22], %50 {strides = array<i32>} : memref<8x128xf32, #tpu.memory_space<vmem>>, vector<8x128xf32>,
    } else {
    }
    return
  }
  func.func @transform_0(%arg0: i32, %arg1: i32) -> (i32, i32) {
    %c1_i32 = arith.constant 1 : i32
    %0 = arith.muli %arg0, %c1_i32 : i32
    %1 = arith.addi %0, %arg1 : i32
    %c0_i32 = arith.constant 0 : i32
    %2 = arith.minsi %1, %c0_i32 : i32
    %c0_i32_0 = arith.constant 0 : i32
    %c0_i32_1 = arith.constant 0 : i32
    return %2, %c0_i32_0 : i32, i32
  }
  func.func @transform_1(%arg0: i32, %arg1: i32) -> (i32, i32) {
    %c1_i32 = arith.constant 1 : i32
    %0 = arith.muli %arg0, %c1_i32 : i32
    %1 = arith.addi %0, %arg1 : i32
    %c0_i32 = arith.constant 0 : i32
    %2 = arith.minsi %1, %c0_i32 : i32
    %c0_i32_0 = arith.constant 0 : i32
    %c0_i32_1 = arith.constant 0 : i32
    return %2, %c0_i32_0 : i32, i32
  }
  func.func @transform_2(%arg0: i32, %arg1: i32) -> (i32, i32) {
    %c1_i32 = arith.constant 1 : i32
    %0 = arith.muli %arg0, %c1_i32 : i32
    %1 = arith.addi %0, %arg1 : i32
    %c0_i32 = arith.constant 0 : i32
    %2 = arith.minsi %1, %c0_i32 : i32
    %c0_i32_0 = arith.constant 0 : i32
    %c0_i32_1 = arith.constant 0 : i32
    return %2, %c0_i32_0 : i32, i32
  }
  func.func @transform_3(%arg0: i32, %arg1: i32) -> (i32, i32) {
    %c0_i32 = arith.constant 0 : i32
    %c0_i32_0 = arith.constant 0 : i32
    return %arg0, %c0_i32 : i32, i32
  }
}

</mosaic_0001>

<llo_original>
// kernel: tpu_custom_call.1
$region0: #{tpu_custom_call.1}
  #allocation0 [shape = 'u32[]', space=smem, size = 0x4, offset = 0x4, fixed_abs, tag = 'smem constant byte address 0x4 - core index']
  #allocation1 [shape = 'u32[144,128]{1,0:T(1,128)}', space=vmem, size = 0x12000, scoped, tag = 'internal scratch']
  #allocation2 [shape = 'f32[1,1]{1,0:T(1,128)}', space=vmem, size = 0x200, scoped, tag = 'scratch operand']
  %s0 = inlined_call_operand.hbm [shape: f32[8,32], index: 0, kind: input, shape index: {}]
  %s1 = inlined_call_operand.hbm [shape: f32[8,32], index: 1, kind: input, shape index: {}]
  %s2 = inlined_call_operand.hbm [shape: f32[8,32], index: 2, kind: input, shape index: {}]
  %s3 = inlined_call_operand.hbm [shape: f32[8,128], index: 3, kind: output, shape index: {}]
  %s4 = sld [smem:[#allocation0]]
  $region42: #{tpu_custom_call.1} parent=0
    _
  %s6 = ssub.s32 1, %s4
  %s7 = scalar_select 0, %s6, %s4
  $region1: #{tpu_custom_call.1} parent=0
    #allocation3 [shape = 'u8[4096]{0}', space=vmem, size = 0x1000, scoped, tag = 'input window, operand 0, single buffered']
    #allocation4 [shape = 's32[1]{0}', space=sflag, size = 0x4, scoped, tag = 'scoped memory for tpu_custom_call.1']
    #allocation5 [shape = 's32[1]{0}', space=sflag, size = 0x4, scoped, tag = 'scoped memory for tpu_custom_call.1']
    #allocation6 [shape = 'u8[4096]{0}', space=vmem, size = 0x1000, scoped, tag = 'input window, operand 1, single buffered']
    #allocation7 [shape = 's32[1]{0}', space=sflag, size = 0x4, scoped, tag = 'scoped memory for tpu_custom_call.1']
    #allocation8 [shape = 'u8[4096]{0}', space=vmem, size = 0x1000, scoped, tag = 'input window, operand 2, single buffered']
    #allocation9 [shape = 'u8[4096]{0}', space=vmem, size = 0x1000, scoped, tag = 'output window, operand 0, single buffered']
    %8 = vsyncpa [#allocation4], 0
    %9 = vsyncpa [#allocation7], 0
    %10 = vsyncpa [#allocation5], 0
    // Predicated region
    $region2: #{tpu_custom_call.1} parent=1 // pred_check
      _
    $region3: #{tpu_custom_call.1} parent=1 // pred_check_branch
      %12 = sbr.rel (0) target = $region5
    $region4: #{tpu_custom_call.1} parent=1 // pred_region
      %s13 = sadd.s32 0, 0
      %p14 = scmp.lt.s32.totalorder %s13, 0
      %s15 = scalar_select %p14, %s13, 0
      %s17 = ssub.s32 128, 128
      %18 = vsyncadd [#allocation4], %s17
      %s19 = smul.addr %s15, 128
      %s20 = scalar_lea.hbm %s0, %s19
      %s22 = sshll.u32 [#allocation3], 4
      %s23 = int_to_ptr.vmem [resolvable:$true] %s22
      %25 = dma.hbm_to_vmem [thread:$0]  %s20, 128, %s23, [#allocation4]
    $region5: #{tpu_custom_call.1} parent=1 // pred_fallthru
      _
    // Predicated region
    $region6: #{tpu_custom_call.1} parent=1 // pred_check
      _
    $region7: #{tpu_custom_call.1} parent=1 // pred_check_branch
      %27 = sbr.rel (0) target = $region9
    $region8: #{tpu_custom_call.1} parent=1 // pred_region
      %s28 = sadd.s32 0, 0
      %p29 = scmp.lt.s32.totalorder %s28, 0
      %s30 = scalar_select %p29, %s28, 0
      %s32 = ssub.s32 128, 128
      %33 = vsyncadd [#allocation7], %s32
      %s34 = smul.addr %s30, 128
      %s35 = scalar_lea.hbm %s1, %s34
      %s37 = sshll.u32 [#allocation6], 4
      %s38 = int_to_ptr.vmem [resolvable:$true] %s37
      %40 = dma.hbm_to_vmem [thread:$0]  %s35, 128, %s38, [#allocation7]
    $region9: #{tpu_custom_call.1} parent=1 // pred_fallthru
      _
    // Predicated region
    $region10: #{tpu_custom_call.1} parent=1 // pred_check
      _
    $region11: #{tpu_custom_call.1} parent=1 // pred_check_branch
      %42 = sbr.rel (0) target = $region13
    $region12: #{tpu_custom_call.1} parent=1 // pred_region
      %s43 = sadd.s32 0, 0
      %p44 = scmp.lt.s32.totalorder %s43, 0
      %s45 = scalar_select %p44, %s43, 0
      %s47 = ssub.s32 128, 128
      %48 = vsyncadd [#allocation7], %s47
      %s49 = smul.addr %s45, 128
      %s50 = scalar_lea.hbm %s2, %s49
      %s52 = sshll.u32 [#allocation8], 4
      %s53 = int_to_ptr.vmem [resolvable:$true] %s52
      %55 = dma.hbm_to_vmem [thread:$0]  %s50, 128, %s53, [#allocation7]
    $region13: #{tpu_custom_call.1} parent=1 // pred_fallthru
      _
    // Predicated region
    $region14: #{tpu_custom_call.1} parent=1 // pred_check
      _
    $region15: #{tpu_custom_call.1} parent=1 // pred_check_branch
      %57 = sbr.rel (0) target = $region17
    $region16: #{tpu_custom_call.1} parent=1 // pred_region
      %58 = dma.done [#allocation4], 128
    $region17: #{tpu_custom_call.1} parent=1 // pred_fallthru
      _
    // Predicated region
    $region18: #{tpu_custom_call.1} parent=1 // pred_check
      _
    $region19: #{tpu_custom_call.1} parent=1 // pred_check_branch
      %60 = sbr.rel (0) target = $region21
    $region20: #{tpu_custom_call.1} parent=1 // pred_region
      %61 = dma.done [#allocation7], 128
    $region21: #{tpu_custom_call.1} parent=1 // pred_fallthru
      _
    // Predicated region
    $region22: #{tpu_custom_call.1} parent=1 // pred_check
      _
    $region23: #{tpu_custom_call.1} parent=1 // pred_check_branch
      %63 = sbr.rel (0) target = $region25
    $region24: #{tpu_custom_call.1} parent=1 // pred_region
      %64 = dma.done [#allocation7], 128
    $region25: #{tpu_custom_call.1} parent=1 // pred_fallthru
      _
    %s65 = sadd.s32 0, 0
    %p66 = scmp.lt.s32.totalorder %s65, 0
    %s67 = scalar_select %p66, %s65, 0
    %s68 = sadd.s32 0, 0
    %p69 = scmp.lt.s32.totalorder %s68, 0
    %s70 = scalar_select %p69, %s68, 0
    %s71 = sadd.s32 0, 0
    %p72 = scmp.lt.s32.totalorder %s71, 0
    %s73 = scalar_select %p72, %s71, 0
    %p74 = scmp.eq.s32.totalorder 0, 0
    // Predicated region
    $region26: #{tpu_custom_call.1} parent=1 // pred_check
      %p75 = pneg %p74
    $region27: #{tpu_custom_call.1} parent=1 // pred_check_branch
      %77 = sbr.rel (%p75) target = $region29
    $region28: #{tpu_custom_call.1} parent=1 // pred_region
      %vm78 = vcmask 0
      %79 = vst.msk [vmem:[#allocation2] sm:$0x1] %vm78, 0.0
    $region29: #{tpu_custom_call.1} parent=1 // pred_fallthru
      _
    %v80 = vld [vmem:[#allocation3] sm:$0xff]
    %v81 = vld [vmem:[#allocation6] sm:$0xff]
    %v82 = vsub.f32 %v80, %v81
    %v83 = vmul.f32 %v82, %v82
    %vm84 = vcmask 261120
    %v85 = vsel %vm84, %v83, 0.0
    %86 = vadd.xlane.f32.xlu0 %v85
    %v87 = vpop.xlane.xlu0 %86
    %v88 = vrsqrt.pop %v87
    %v89 = vmul.f32 %v87, %v88
    %vm90 = vcmp.eq.f32.partialorder %v87, inf
    %v91 = vsel %vm90, %v87, %v89
    %vm92 = vcmp.eq.f32.partialorder %v87, 0.0
    %v93 = vand.u32 %v87, 2147483648
    %v94 = vsel %vm92, %v93, %v91
    %v95 = vld [vmem:[#allocation8] sm:$0xff]
    %v96 = vsub.f32 %v80, %v95
    %v97 = vmul.f32 %v96, %v96
    %v98 = vsel %vm84, %v97, 0.0
    %99 = vadd.xlane.f32.xlu0 %v98
    %v100 = vpop.xlane.xlu0 %99
    %v101 = vrsqrt.pop %v100
    %v102 = vmul.f32 %v100, %v101
    %vm103 = vcmp.eq.f32.partialorder %v100, inf
    %v104 = vsel %vm103, %v100, %v102
    %vm105 = vcmp.eq.f32.partialorder %v100, 0.0
    %v106 = vand.u32 %v100, 2147483648
    %v107 = vsel %vm105, %v106, %v104
    %v108 = vsub.f32 %v107, %v94
    %v109 = vsub.f32 0.0, %v108
    %v110 = vmax.f32 %v109, 0.0
    %v111 = vand.u32 2147483647, %v108
    %v112 = vsub.f32 0.0, %v111
    %v113 = vmul.f32 %v112, 1.442695
    %v114 = vpow.pop %v113
    %v115 = vadd.f32 %v114, 1.0
    %v116 = vlog2.pop %v115
    %v117 = vmul.f32 %v116, 0.6931472
    %v118 = vmul.f32 -0.5, %v114
    %v119 = vadd.f32 %v118, 1.0
    %v120 = vmul.f32 %v119, %v114
    %v121 = vand.u32 2147483647, %v114
    %vm122 = vcmp.lt.f32.partialorder %v121, 0.0004427343
    %v123 = vsel %vm122, %v120, %v117
    %v124 = vadd.f32 %v110, %v123
    %s125 = sadd.s32 0, 0
    %s126 = smul.u32 %s125, 8
    %v127 = vlaneseq
    %v128 = vshrl.u32 %v127, 7
    %v129 = vstv %s126
    %v130 = vadd.s32 %v128, %v129
    %vm131 = vcmp.lt.s32.totalorder %v130, 8
    %v132 = vsel %vm131, %v124, 0.0
    %v133 = vld [vmem:[#allocation2] sm:$0x1]
    %vm134 = vcmask 7168
    %v135 = vsel %vm134, %v132, 0.0
    %136 = vadd.xlane.f32.xlu0 %v135
    %v137 = vpop.xlane.xlu0 %136
    %v138 = vrot.slane %v137, 4
    %v139 = vadd.f32 %v137, %v138
    %v140 = vrot.slane %v139, 2
    %v141 = vadd.f32 %v139, %v140
    %v142 = vrot.slane %v141, 1
    %v143 = vadd.f32 %v141, %v142
    %s144 = vtos %v143
    %v145 = vstv %s144
    %v146 = vadd.f32 %v133, %v145
    %vm147 = vcmask 0
    %148 = vst.msk [vmem:[#allocation2] sm:$0x1] %vm147, %v146
    // Predicated region
    $region30: #{tpu_custom_call.1} parent=1 // pred_check
      %p149 = pneg %p74
    $region31: #{tpu_custom_call.1} parent=1 // pred_check_branch
      %151 = sbr.rel (%p149) target = $region33
    $region32: #{tpu_custom_call.1} parent=1 // pred_region
      %v152 = vld [vmem:[#allocation2] sm:$0x1]
      %v154 = vlaneseq
      %v155 = vshrl.u32 %v154, 7
      %v156 = vsub.s32 0, %v155
      %v157 = vrot.slane %v152, %v156
      %158 = vset.pattern.permute.xlu0 0
      %159 = vperm.xlu0 %158, %v157
      %v160 = vpop.permute.xlu0 %159
      %162 = vst [vmem:[#allocation9] sm:$0xff] %v160
    $region33: #{tpu_custom_call.1} parent=1 // pred_fallthru
      _
    // Predicated region
    $region34: #{tpu_custom_call.1} parent=1 // pred_check
      _
    $region35: #{tpu_custom_call.1} parent=1 // pred_check_branch
      %164 = sbr.rel (0) target = $region37
    $region36: #{tpu_custom_call.1} parent=1 // pred_region
      %s166 = ssub.s32 128, 128
      %167 = vsyncadd [#allocation5], %s166
      %s169 = sshll.u32 [#allocation9], 4
      %s170 = int_to_ptr.vmem [resolvable:$true] %s169
      %172 = dma.vmem_to_hbm [thread:$0]  %s170, 128, %s3, [#allocation5]
    $region37: #{tpu_custom_call.1} parent=1 // pred_fallthru
      _
    // Predicated region
    $region38: #{tpu_custom_call.1} parent=1 // pred_check
      _
    $region39: #{tpu_custom_call.1} parent=1 // pred_check_branch
      %174 = sbr.rel (0) target = $region41
    $region40: #{tpu_custom_call.1} parent=1 // pred_region
      %175 = dma.done [#allocation5], 128
    $region41: #{tpu_custom_call.1} parent=1 // pred_fallthru
      _
    %176 = vsyncpa [#allocation4], 1
    %177 = vsyncpa [#allocation7], 1
    %178 = vsyncpa [#allocation5], 1

</llo_original>
